<compile_context>
chip_gen: v7x
topology: tpu7x:2x2x1
jax: 0.10.0
libtpu: 0.0.40
codegen_flags: <defaults>
</compile_context>

<pallas_src>
import functools

import jax
import jax.numpy as jnp
from jax import lax
from jax.experimental import pallas as pl
from jax.experimental.pallas import tpu as pltpu

H1 = 100        # lin1/lin2 hidden width in the PyTorch module
H_PAD = 128     # lane-padded hidden width
HEAD_PAD = 128  # lane-dense fused-head output width (col 0 = FVC, col 1 = sigma)


def _round_up(x, m):
    return (x + m - 1) // m * m


# ---------------------------------------------------------------------------
# Kernel
# ---------------------------------------------------------------------------
def _osic_kernel(x_cont_ref, x_cat_ref,
                 w1c_ref, w1e_ref, b1_ref,
                 w2_ref, b2_ref, wh_ref, bh_ref,
                 out_ref, *, cat_offsets, cats_pad, compute_dtype):
    """Fused forward for one batch tile: one-hot embedding lookup (MXU) + 3 MLP layers."""
    tb = x_cont_ref.shape[0]

    # --- embedding lookup as one-hot @ (table @ W1_slice); tables folded into w1e ---
    cols = lax.broadcasted_iota(jnp.int32, (tb, cats_pad), 1)
    xcat = x_cat_ref[...]                                       # (TB, n_cat) int32
    match = None
    for j, off in enumerate(cat_offsets):                       # n_cat tiny -> unrolled
        m = cols == (xcat[:, j:j + 1] + off)
        match = m if match is None else (match | m)
    one_hot = match.astype(compute_dtype)                       # (TB, CATS_PAD)

    xc = x_cont_ref[...].astype(compute_dtype)                  # (TB, n_cont)

    # --- lin1 (continuous part + fused embedding part) -> ReLU, f32 accumulation ---
    h = jnp.dot(xc, w1c_ref[...], preferred_element_type=jnp.float32)
    h += jnp.dot(one_hot, w1e_ref[...], preferred_element_type=jnp.float32)
    h = jnp.maximum(h + b1_ref[...], 0.0)                       # (TB, 128) f32

    # --- lin2 -> ReLU ---
    h = jnp.dot(h.astype(compute_dtype), w2_ref[...],
                preferred_element_type=jnp.float32)
    h = jnp.maximum(h + b2_ref[...], 0.0)                       # (TB, 128) f32

    # --- fused heads (lin3 | sigma) -> ReLU, lane-dense store ---
    o = jnp.dot(h.astype(compute_dtype), wh_ref[...],
                preferred_element_type=jnp.float32)
    out_ref[...] = jnp.maximum(o + bh_ref[...], 0.0)            # (TB, 128) f32


# ---------------------------------------------------------------------------
# Offline weight preparation (fold embeddings into lin1, fuse heads, pad to 128 lanes)
# ---------------------------------------------------------------------------
def prepare_kernel_params(params, embedding_sizes, n_cont, compute_dtype=jnp.float32):
    emb_tables, (w1, b1), (w2, b2), (w3, b3), (ws, bs) = params
    cats = [c for c, _ in embedding_sizes]
    dims = [d for _, d in embedding_sizes]
    total_cats = sum(cats)
    cats_pad = _round_up(total_cats, 8)
    cat_offsets = tuple(int(sum(cats[:j])) for j in range(len(cats)))

    w1 = w1.astype(jnp.float32)
    w1_cont = w1[:n_cont]                                       # (n_cont, 100)
    fused = []
    off = n_cont
    for tbl, d in zip(emb_tables, dims):
        fused.append(tbl.astype(jnp.float32) @ w1[off:off + d])  # (cats_i, 100)
        off += d
    w1_emb = jnp.concatenate(fused, axis=0)                     # (total_cats, 100)
    w1_emb = jnp.pad(w1_emb, ((0, cats_pad - total_cats), (0, H_PAD - H1)))
    w1_cont = jnp.pad(w1_cont, ((0, 0), (0, H_PAD - H1)))

    b1p = jnp.pad(b1.reshape(1, -1).astype(jnp.float32), ((0, 0), (0, H_PAD - H1)))
    w2p = jnp.pad(w2.astype(jnp.float32), ((0, H_PAD - H1), (0, H_PAD - H1)))
    b2p = jnp.pad(b2.reshape(1, -1).astype(jnp.float32), ((0, 0), (0, H_PAD - H1)))

    wh = jnp.concatenate([w3, ws], axis=1).astype(jnp.float32)  # (100, 2)
    whp = jnp.pad(wh, ((0, H_PAD - H1), (0, HEAD_PAD - wh.shape[1])))
    bh = jnp.concatenate([b3.reshape(1, -1), bs.reshape(1, -1)], axis=1)
    bhp = jnp.pad(bh.astype(jnp.float32), ((0, 0), (0, HEAD_PAD - bh.shape[1])))

    kparams = dict(
        w1c=w1_cont.astype(compute_dtype),
        w1e=w1_emb.astype(compute_dtype),
        b1=b1p,
        w2=w2p.astype(compute_dtype),
        b2=b2p,
        wh=whp.astype(compute_dtype),
        bh=bhp,
    )
    meta = dict(cat_offsets=cat_offsets, cats_pad=cats_pad, compute_dtype=compute_dtype)
    return kparams, meta


# ---------------------------------------------------------------------------
# Wrapper
# ---------------------------------------------------------------------------
def osic_forward(kparams, meta, x_cat, x_cont, *, tb_max=1024):
    B, n_cont = x_cont.shape
    n_cat = x_cat.shape[1]

    # Batch tile: multiple of 8 sublanes (or the full batch for tiny B).
    tb = min(tb_max, _round_up(B, 8))
    if tb > B:
        tb = B
    grid = (pl.cdiv(B, tb),)

    kernel = functools.partial(
        _osic_kernel,
        cat_offsets=meta["cat_offsets"],
        cats_pad=meta["cats_pad"],
        compute_dtype=meta["compute_dtype"],
    )

    def row_block(shape):
        return pl.BlockSpec(shape, lambda i: (i, 0))

    def resident(arr):  # weights: constant index_map -> stays in VMEM across grid steps
        return pl.BlockSpec(arr.shape, lambda i: (0, 0))

    out = pl.pallas_call(
        kernel,
        out_shape=jax.ShapeDtypeStruct((B, HEAD_PAD), jnp.float32),
        grid=grid,
        in_specs=[
            row_block((tb, n_cont)),
            row_block((tb, n_cat)),
            resident(kparams["w1c"]),
            resident(kparams["w1e"]),
            resident(kparams["b1"]),
            resident(kparams["w2"]),
            resident(kparams["b2"]),
            resident(kparams["wh"]),
            resident(kparams["bh"]),
        ],
        out_specs=row_block((tb, HEAD_PAD)),
        compiler_params=pltpu.CompilerParams(
            dimension_semantics=("parallel",)),   # uses both TCs on v7x; no-op elsewhere
    )(x_cont, x_cat, kparams["w1c"], kparams["w1e"], kparams["b1"],
      kparams["w2"], kparams["b2"], kparams["wh"], kparams["bh"])

    fvc = out[:, 0:1]
    sigma = out[:, 1:2]
    return fvc, sigma


# ---------------------------------------------------------------------------
# Parameter init (PyTorch-equivalent shapes; Linear weights stored transposed (in, out))
# ---------------------------------------------------------------------------
def init_params(key, embedding_sizes, n_cont):
    keys = jax.random.split(key, 16)
    ki = iter(keys)

    emb_tables = [jax.random.normal(next(ki), (cats, size), dtype=jnp.float32)
                  for cats, size in embedding_sizes]

    def linear(k, n_in, n_out):
        kw, kb = jax.random.split(k)
        bound = 1.0 / jnp.sqrt(jnp.float32(n_in))
        w = jax.random.uniform(kw, (n_in, n_out), jnp.float32, -bound, bound)
        b = jax.random.uniform(kb, (1, n_out), jnp.float32, -bound, bound)
        return w, b

    lin1 = linear(next(ki), 55, 100)
    lin2 = linear(next(ki), 100, 100)
    lin3 = linear(next(ki), 100, 1)
    sigma = linear(next(ki), 100, 1)
    return emb_tables, lin1, lin2, lin3, sigma


def reference_forward(params, x_cat, x_cont):
    """Pure-JAX reference matching the PyTorch forward."""
    emb_tables, (w1, b1), (w2, b2), (w3, b3), (ws, bs) = params
    emb_outs = [jnp.take(tbl, x_cat[:, i], axis=0) for i, tbl in enumerate(emb_tables)]
    out = jnp.concatenate([x_cont] + emb_outs, axis=1)
    out = jax.nn.relu(out @ w1 + b1)
    out = jax.nn.relu(out @ w2 + b2)
    fvc = jax.nn.relu(out @ w3 + b3)
    sigma = jax.nn.relu(out @ ws + bs)
    return fvc, sigma


if __name__ == "__main__":
    # embedding_sizes s.t. n_emb + n_cont == 55 (lin1 expects 55 input features)
    embedding_sizes = [(10, 5), (7, 4), (4, 3)]   # n_emb = 12
    n_cont = 43
    B = 8

    key = jax.random.PRNGKey(0)
    k_params, k_cat, k_cont = jax.random.split(key, 3)
    params = init_params(k_params, embedding_sizes, n_cont)

    n_cat = len(embedding_sizes)
    max_cats = jnp.array([c for c, _ in embedding_sizes], dtype=jnp.int32)
    x_cat = jax.random.randint(k_cat, (B, n_cat), 0, 1_000_000, dtype=jnp.int32) % max_cats
    x_cont = jax.random.normal(k_cont, (B, n_cont), dtype=jnp.float32)

    fvc_ref, sigma_ref = reference_forward(params, x_cat, x_cont)

    # --- default f32 path: tight correctness check against the pure-JAX reference ---
    kparams, meta = prepare_kernel_params(params, embedding_sizes, n_cont,
                                          compute_dtype=jnp.float32)
    fwd = jax.jit(functools.partial(osic_forward, kparams, meta))
    fvc, sigma = fwd(x_cat, x_cont)
    jax.block_until_ready((fvc, sigma))
    assert fvc.shape == (B, 1) and sigma.shape == (B, 1)
    assert jnp.allclose(fvc, fvc_ref, atol=1e-4, rtol=1e-4)
    assert jnp.allclose(sigma, sigma_ref, atol=1e-4, rtol=1e-4)

    # --- bf16 matmul-input path (v6e/v7x throughput option; f32 accumulation/bias/ReLU) ---
    kparams16, meta16 = prepare_kernel_params(params, embedding_sizes, n_cont,
                                              compute_dtype=jnp.bfloat16)
    fwd16 = jax.jit(functools.partial(osic_forward, kparams16, meta16))
    fvc16, sigma16 = fwd16(x_cat, x_cont)
    jax.block_until_ready((fvc16, sigma16))
    assert jnp.allclose(fvc16, fvc_ref, atol=2e-1, rtol=1e-1)
    assert jnp.allclose(sigma16, sigma_ref, atol=2e-1, rtol=1e-1)

    print("KERNEL_OK")
</pallas_src>

<mosaic_0001>
module attributes {stable_mosaic.version = 11 : i64} {
  func.func @_osic_kernel(%arg0: i32, %arg1: memref<8x43xf32, #tpu.memory_space<vmem>>, %arg2: memref<8x3xi32, #tpu.memory_space<vmem>>, %arg3: memref<43x128xf32, #tpu.memory_space<vmem>>, %arg4: memref<24x128xf32, #tpu.memory_space<vmem>>, %arg5: memref<1x128xf32, #tpu.memory_space<vmem>>, %arg6: memref<128x128xf32, #tpu.memory_space<vmem>>, %arg7: memref<1x128xf32, #tpu.memory_space<vmem>>, %arg8: memref<128x128xf32, #tpu.memory_space<vmem>>, %arg9: memref<1x128xf32, #tpu.memory_space<vmem>>, %arg10: memref<8x128xf32, #tpu.memory_space<vmem>>) attributes {dimension_semantics = [#tpu.dimension_semantics<parallel>], iteration_bounds = array<i64: 1>, scalar_prefetch = 0 : i64, scratch_operands = 0 : i64, tpu.core_type = #tpu.core_type<tc>, window_params = [{transform_indices = @transform_0, window_bounds = array<i64: 8, 43>}, {transform_indices = @transform_1, window_bounds = array<i64: 8, 3>}, {pipeline_mode = #tpu.pipeline_mode<synchronous>, transform_indices = @transform_2, window_bounds = array<i64: 43, 128>}, {pipeline_mode = #tpu.pipeline_mode<synchronous>, transform_indices = @transform_3, window_bounds = array<i64: 24, 128>}, {pipeline_mode = #tpu.pipeline_mode<synchronous>, transform_indices = @transform_4, window_bounds = array<i64: 1, 128>}, {pipeline_mode = #tpu.pipeline_mode<synchronous>, transform_indices = @transform_5, window_bounds = array<i64: 128, 128>}, {pipeline_mode = #tpu.pipeline_mode<synchronous>, transform_indices = @transform_6, window_bounds = array<i64: 1, 128>}, {pipeline_mode = #tpu.pipeline_mode<synchronous>, transform_indices = @transform_7, window_bounds = array<i64: 128, 128>}, {pipeline_mode = #tpu.pipeline_mode<synchronous>, transform_indices = @transform_8, window_bounds = array<i64: 1, 128>}, {transform_indices = @transform_9, window_bounds = array<i64: 8, 128>}]} {
    %0 = tpu.iota {dimensions = array<i32: 1>} : vector<8x24xi32>
    %c0 = arith.constant 0 : index
    %c0_0 = arith.constant 0 : index
    %1 = vector.load %arg2[%c0, %c0_0] : memref<8x3xi32, #tpu.memory_space<vmem>>, vector<8x3xi32>
    %2 = vector.extract_strided_slice %1 {offsets = [0, 0], sizes = [8, 1], strides = [1, 1]} : vector<8x3xi32> to vector<8x1xi32>
    %c0_i32 = arith.constant 0 : i32
    %3 = vector.broadcast %c0_i32 : i32 to vector<8x1xi32>
    %4 = arith.addi %2, %3 : vector<8x1xi32>
    %5 = vector.broadcast %4 : vector<8x1xi32> to vector<8x24xi32>
    %6 = arith.cmpi eq, %0, %5 : vector<8x24xi32>
    %7 = vector.extract_strided_slice %1 {offsets = [0, 1], sizes = [8, 1], strides = [1, 1]} : vector<8x3xi32> to vector<8x1xi32>
    %c10_i32 = arith.constant 10 : i32
    %8 = vector.broadcast %c10_i32 : i32 to vector<8x1xi32>
    %9 = arith.addi %7, %8 : vector<8x1xi32>
    %10 = vector.broadcast %9 : vector<8x1xi32> to vector<8x24xi32>
    %11 = arith.cmpi eq, %0, %10 : vector<8x24xi32>
    %12 = arith.ori %6, %11 : vector<8x24xi1>
    %13 = vector.extract_strided_slice %1 {offsets = [0, 2], sizes = [8, 1], strides = [1, 1]} : vector<8x3xi32> to vector<8x1xi32>
    %c17_i32 = arith.constant 17 : i32
    %14 = vector.broadcast %c17_i32 : i32 to vector<8x1xi32>
    %15 = arith.addi %13, %14 : vector<8x1xi32>
    %16 = vector.broadcast %15 : vector<8x1xi32> to vector<8x24xi32>
    %17 = arith.cmpi eq, %0, %16 : vector<8x24xi32>
    %18 = arith.ori %12, %17 : vector<8x24xi1>
    %19 = arith.extui %18 : vector<8x24xi1> to vector<8x24xi32>
    %20 = arith.sitofp %19 : vector<8x24xi32> to vector<8x24xf32>
    %c0_1 = arith.constant 0 : index
    %c0_2 = arith.constant 0 : index
    %21 = vector.load %arg1[%c0_1, %c0_2] : memref<8x43xf32, #tpu.memory_space<vmem>>, vector<8x43xf32>
    %c0_3 = arith.constant 0 : index
    %c0_4 = arith.constant 0 : index
    %22 = vector.load %arg3[%c0_3, %c0_4] : memref<43x128xf32, #tpu.memory_space<vmem>>, vector<43x128xf32>
    %cst = arith.constant dense<0.000000e+00> : vector<8x128xf32>
    %23 = tpu.matmul %21, %22, %cst {dimension_numbers = #tpu.dot_dimension_numbers<[1], [0], [0], [1], [0, 0, 1, 1], [], []>} : vector<8x43xf32>, vector<43x128xf32>, vector<8x128xf32> -> vector<8x128xf32>
    %c0_5 = arith.constant 0 : index
    %c0_6 = arith.constant 0 : index
    %24 = vector.load %arg4[%c0_5, %c0_6] : memref<24x128xf32, #tpu.memory_space<vmem>>, vector<24x128xf32>
    %cst_7 = arith.constant dense<0.000000e+00> : vector<8x128xf32>
    %25 = tpu.matmul %20, %24, %cst_7 {dimension_numbers = #tpu.dot_dimension_numbers<[1], [0], [0], [1], [0, 0, 1, 1], [], []>} : vector<8x24xf32>, vector<24x128xf32>, vector<8x128xf32> -> vector<8x128xf32>
    %26 = arith.addf %23, %25 : vector<8x128xf32>
    %c0_8 = arith.constant 0 : index
    %c0_9 = arith.constant 0 : index
    %27 = vector.load %arg5[%c0_8, %c0_9] : memref<1x128xf32, #tpu.memory_space<vmem>>, vector<1x128xf32>
    %28 = vector.broadcast %27 : vector<1x128xf32> to vector<8x128xf32>
    %29 = arith.addf %26, %28 : vector<8x128xf32>
    %cst_10 = arith.constant 0.000000e+00 : f32
    %30 = vector.broadcast %cst_10 : f32 to vector<8x128xf32>
    %31 = arith.maximumf %29, %30 : vector<8x128xf32>
    %c0_11 = arith.constant 0 : index
    %c0_12 = arith.constant 0 : index
    %32 = vector.load %arg6[%c0_11, %c0_12] : memref<128x128xf32, #tpu.memory_space<vmem>>, vector<128x128xf32>
    %cst_13 = arith.constant dense<0.000000e+00> : vector<8x128xf32>
    %33 = tpu.matmul %31, %32, %cst_13 {dimension_numbers = #tpu.dot_dimension_numbers<[1], [0], [0], [1], [0, 0, 1, 1], [], []>} : vector<8x128xf32>, vector<128x128xf32>, vector<8x128xf32> -> vector<8x128xf32>
    %c0_14 = arith.constant 0 : index
    %c0_15 = arith.constant 0 : index
    %34 = vector.load %arg7[%c0_14, %c0_15] : memref<1x128xf32, #tpu.memory_space<vmem>>, vector<1x128xf32>
    %35 = vector.broadcast %34 : vector<1x128xf32> to vector<8x128xf32>
    %36 = arith.addf %33, %35 : vector<8x128xf32>
    %cst_16 = arith.constant 0.000000e+00 : f32
    %37 = vector.broadcast %cst_16 : f32 to vector<8x128xf32>
    %38 = arith.maximumf %36, %37 : vector<8x128xf32>
    %c0_17 = arith.constant 0 : index
    %c0_18 = arith.constant 0 : index
    %39 = vector.load %arg8[%c0_17, %c0_18] : memref<128x128xf32, #tpu.memory_space<vmem>>, vector<128x128xf32>
    %cst_19 = arith.constant dense<0.000000e+00> : vector<8x128xf32>
    %40 = tpu.matmul %38, %39, %cst_19 {dimension_numbers = #tpu.dot_dimension_numbers<[1], [0], [0], [1], [0, 0, 1, 1], [], []>} : vector<8x128xf32>, vector<128x128xf32>, vector<8x128xf32> -> vector<8x128xf32>
    %c0_20 = arith.constant 0 : index
    %c0_21 = arith.constant 0 : index
    %41 = vector.load %arg9[%c0_20, %c0_21] : memref<1x128xf32, #tpu.memory_space<vmem>>, vector<1x128xf32>
    %42 = vector.broadcast %41 : vector<1x128xf32> to vector<8x128xf32>
    %43 = arith.addf %40, %42 : vector<8x128xf32>
    %cst_22 = arith.constant 0.000000e+00 : f32
    %44 = vector.broadcast %cst_22 : f32 to vector<8x128xf32>
    %45 = arith.maximumf %43, %44 : vector<8x128xf32>
    %c0_23 = arith.constant 0 : index
    %c0_24 = arith.constant 0 : index
    %46 = vector.load %arg10[%c0_23, %c0_24] : memref<8x128xf32, #tpu.memory_space<vmem>>, vector<8x128xf32>
    tpu.vector_store %arg10[%c0_23, %c0_24], %45 {strides = array<i32>} : memref<8x128xf32, #tpu.memory_space<vmem>>, vector<8x128xf32>,
    return
  }
  func.func @transform_0(%arg0: i32) -> (i32, i32) {
    %c0_i32 = arith.constant 0 : i32
    %c0_i32_0 = arith.constant 0 : i32
    return %arg0, %c0_i32 : i32, i32
  }
  func.func @transform_1(%arg0: i32) -> (i32, i32) {
    %c0_i32 = arith.constant 0 : i32
    %c0_i32_0 = arith.constant 0 : i32
    return %arg0, %c0_i32 : i32, i32
  }
  func.func @transform_2(%arg0: i32) -> (i32, i32) {
    %c0_i32 = arith.constant 0 : i32
    %c0_i32_0 = arith.constant 0 : i32
    %c0_i32_1 = arith.constant 0 : i32
    return %c0_i32, %c0_i32_0 : i32, i32
  }
  func.func @transform_3(%arg0: i32) -> (i32, i32) {
    %c0_i32 = arith.constant 0 : i32
    %c0_i32_0 = arith.constant 0 : i32
    %c0_i32_1 = arith.constant 0 : i32
    return %c0_i32, %c0_i32_0 : i32, i32
  }
  func.func @transform_4(%arg0: i32) -> (i32, i32) {
    %c0_i32 = arith.constant 0 : i32
    %c0_i32_0 = arith.constant 0 : i32
    %c0_i32_1 = arith.constant 0 : i32
    return %c0_i32, %c0_i32_0 : i32, i32
  }
  func.func @transform_5(%arg0: i32) -> (i32, i32) {
    %c0_i32 = arith.constant 0 : i32
    %c0_i32_0 = arith.constant 0 : i32
    %c0_i32_1 = arith.constant 0 : i32
    return %c0_i32, %c0_i32_0 : i32, i32
  }
  func.func @transform_6(%arg0: i32) -> (i32, i32) {
    %c0_i32 = arith.constant 0 : i32
    %c0_i32_0 = arith.constant 0 : i32
    %c0_i32_1 = arith.constant 0 : i32
    return %c0_i32, %c0_i32_0 : i32, i32
  }
  func.func @transform_7(%arg0: i32) -> (i32, i32) {
    %c0_i32 = arith.constant 0 : i32
    %c0_i32_0 = arith.constant 0 : i32
    %c0_i32_1 = arith.constant 0 : i32
    return %c0_i32, %c0_i32_0 : i32, i32
  }
  func.func @transform_8(%arg0: i32) -> (i32, i32) {
    %c0_i32 = arith.constant 0 : i32
    %c0_i32_0 = arith.constant 0 : i32
    %c0_i32_1 = arith.constant 0 : i32
    return %c0_i32, %c0_i32_0 : i32, i32
  }
  func.func @transform_9(%arg0: i32) -> (i32, i32) {
    %c0_i32 = arith.constant 0 : i32
    %c0_i32_0 = arith.constant 0 : i32
    return %arg0, %c0_i32 : i32, i32
  }
}

</mosaic_0001>

<llo_original>
// kernel: osic_forward.1
$region0: #{osic_forward.1}
  #allocation0 [shape = 'u32[]', space=smem, size = 0x4, offset = 0x4, fixed_abs, tag = 'smem constant byte address 0x4 - core index']
  #allocation1 [shape = 'u32[144,128]{1,0:T(1,128)}', space=vmem, size = 0x12000, scoped, tag = 'internal scratch']
  %s0 = inlined_call_operand.vmem [shape: f32[8,43], index: 0, kind: input, shape index: {}]
  %s1 = inlined_call_operand.vmem [shape: s32[8,3], index: 1, kind: input, shape index: {}]
  %s2 = inlined_call_operand.hbm [shape: f32[43,128], index: 2, kind: input, shape index: {}]
  %s3 = inlined_call_operand.hbm [shape: f32[24,128], index: 3, kind: input, shape index: {}]
  %s4 = inlined_call_operand.vmem [shape: f32[1,128], index: 4, kind: input, shape index: {}]
  %s5 = inlined_call_operand.hbm [shape: f32[128,128], index: 5, kind: input, shape index: {}]
  %s6 = inlined_call_operand.vmem [shape: f32[1,128], index: 6, kind: input, shape index: {}]
  %s7 = inlined_call_operand.hbm [shape: f32[128,128], index: 7, kind: input, shape index: {}]
  %s8 = inlined_call_operand.vmem [shape: f32[1,128], index: 8, kind: input, shape index: {}]
  %s9 = inlined_call_operand.vmem [shape: f32[8,128], index: 9, kind: output, shape index: {}]
  %s10 = sld [smem:[#allocation0]]
  $region62: #{osic_forward.1} parent=0
    _
  %s12 = ssub.s32 1, %s10
  %s13 = scalar_select 0, %s12, %s10
  $region1: #{osic_forward.1} parent=0
    #allocation2 [shape = 'u8[24576]{0}', space=vmem, size = 0x6000, scoped, tag = 'input window, operand 2, single buffered']
    #allocation3 [shape = 's32[1]{0}', space=sflag, size = 0x4, scoped, tag = 'scoped memory for osic_forward.1']
    #allocation4 [shape = 'u8[12288]{0}', space=vmem, size = 0x3000, scoped, tag = 'input window, operand 3, single buffered']
    #allocation5 [shape = 's32[1]{0}', space=sflag, size = 0x4, scoped, tag = 'scoped memory for osic_forward.1']
    #allocation6 [shape = 'u8[65536]{0}', space=vmem, size = 0x10000, scoped, tag = 'input window, operand 5, single buffered']
    #allocation7 [shape = 'u8[65536]{0}', space=vmem, size = 0x10000, scoped, tag = 'input window, operand 7, single buffered']
    #allocation8 [shape = 's32[1]{0}', space=sflag, size = 0x4, scoped, tag = 'scoped memory for osic_forward.1']
    %14 = vsyncpa [#allocation3], 0
    %15 = vsyncpa [#allocation5], 0
    %16 = vsyncpa [#allocation8], 0
    // Predicated region
    $region2: #{osic_forward.1} parent=1 // pred_check
      _
    $region3: #{osic_forward.1} parent=1 // pred_check_branch
      %18 = sbr.rel (0) target = $region5
    $region4: #{osic_forward.1} parent=1 // pred_region
      _
    $region5: #{osic_forward.1} parent=1 // pred_fallthru
      _
    // Predicated region
    $region6: #{osic_forward.1} parent=1 // pred_check
      _
    $region7: #{osic_forward.1} parent=1 // pred_check_branch
      %20 = sbr.rel (0) target = $region9
    $region8: #{osic_forward.1} parent=1 // pred_region
      _
    $region9: #{osic_forward.1} parent=1 // pred_fallthru
      _
    // Predicated region
    $region10: #{osic_forward.1} parent=1 // pred_check
      _
    $region11: #{osic_forward.1} parent=1 // pred_check_branch
      %22 = sbr.rel (0) target = $region13
    $region12: #{osic_forward.1} parent=1 // pred_region
      %s24 = ssub.s32 768, 768
      %25 = vsyncadd [#allocation3], %s24
      %s26 = sshll.u32 [#allocation2], 4
      %s27 = int_to_ptr.vmem [resolvable:$true] %s26
      %32 = dma.hbm_to_vmem [thread:$0]  %s2, 768, %s27, [#allocation3], 128, 128, 8
    $region13: #{osic_forward.1} parent=1 // pred_fallthru
      _
    // Predicated region
    $region14: #{osic_forward.1} parent=1 // pred_check
      _
    $region15: #{osic_forward.1} parent=1 // pred_check_branch
      %34 = sbr.rel (0) target = $region17
    $region16: #{osic_forward.1} parent=1 // pred_region
      %s36 = ssub.s32 384, 384
      %37 = vsyncadd [#allocation5], %s36
      %s38 = sshll.u32 [#allocation4], 4
      %s39 = int_to_ptr.vmem [resolvable:$true] %s38
      %44 = dma.hbm_to_vmem [thread:$0]  %s3, 384, %s39, [#allocation5], 128, 128, 8
    $region17: #{osic_forward.1} parent=1 // pred_fallthru
      _
    // Predicated region
    $region18: #{osic_forward.1} parent=1 // pred_check
      _
    $region19: #{osic_forward.1} parent=1 // pred_check_branch
      %46 = sbr.rel (0) target = $region21
    $region20: #{osic_forward.1} parent=1 // pred_region
      _
    $region21: #{osic_forward.1} parent=1 // pred_fallthru
      _
    // Predicated region
    $region22: #{osic_forward.1} parent=1 // pred_check
      _
    $region23: #{osic_forward.1} parent=1 // pred_check_branch
      %48 = sbr.rel (0) target = $region25
    $region24: #{osic_forward.1} parent=1 // pred_region
      %s50 = ssub.s32 2048, 2048
      %51 = vsyncadd [#allocation5], %s50
      %s52 = sshll.u32 [#allocation6], 4
      %s53 = int_to_ptr.vmem [resolvable:$true] %s52
      %58 = dma.hbm_to_vmem [thread:$0]  %s5, 2048, %s53, [#allocation5], 128, 128, 8
    $region25: #{osic_forward.1} parent=1 // pred_fallthru
      _
    // Predicated region
    $region26: #{osic_forward.1} parent=1 // pred_check
      _
    $region27: #{osic_forward.1} parent=1 // pred_check_branch
      %60 = sbr.rel (0) target = $region29
    $region28: #{osic_forward.1} parent=1 // pred_region
      _
    $region29: #{osic_forward.1} parent=1 // pred_fallthru
      _
    // Predicated region
    $region30: #{osic_forward.1} parent=1 // pred_check
      _
    $region31: #{osic_forward.1} parent=1 // pred_check_branch
      %62 = sbr.rel (0) target = $region33
    $region32: #{osic_forward.1} parent=1 // pred_region
      %s64 = ssub.s32 2048, 2048
      %65 = vsyncadd [#allocation8], %s64
      %s66 = sshll.u32 [#allocation7], 4
      %s67 = int_to_ptr.vmem [resolvable:$true] %s66
      %72 = dma.hbm_to_vmem [thread:$0]  %s7, 2048, %s67, [#allocation8], 128, 128, 8
    $region33: #{osic_forward.1} parent=1 // pred_fallthru
      _
    // Predicated region
    $region34: #{osic_forward.1} parent=1 // pred_check
      _
    $region35: #{osic_forward.1} parent=1 // pred_check_branch
      %74 = sbr.rel (0) target = $region37
    $region36: #{osic_forward.1} parent=1 // pred_region
      _
    $region37: #{osic_forward.1} parent=1 // pred_fallthru
      _
    // Predicated region
    $region38: #{osic_forward.1} parent=1 // pred_check
      _
    $region39: #{osic_forward.1} parent=1 // pred_check_branch
      %76 = sbr.rel (0) target = $region41
    $region40: #{osic_forward.1} parent=1 // pred_region
      %77 = dma.done [#allocation3], 768
    $region41: #{osic_forward.1} parent=1 // pred_fallthru
      _
    // Predicated region
    $region42: #{osic_forward.1} parent=1 // pred_check
      _
    $region43: #{osic_forward.1} parent=1 // pred_check_branch
      %79 = sbr.rel (0) target = $region45
    $region44: #{osic_forward.1} parent=1 // pred_region
      %80 = dma.done [#allocation5], 384
    $region45: #{osic_forward.1} parent=1 // pred_fallthru
      _
    // Predicated region
    $region46: #{osic_forward.1} parent=1 // pred_check
      _
    $region47: #{osic_forward.1} parent=1 // pred_check_branch
      %82 = sbr.rel (0) target = $region49
    $region48: #{osic_forward.1} parent=1 // pred_region
      %83 = dma.done [#allocation5], 2048
    $region49: #{osic_forward.1} parent=1 // pred_fallthru
      _
    // Predicated region
    $region50: #{osic_forward.1} parent=1 // pred_check
      _
    $region51: #{osic_forward.1} parent=1 // pred_check_branch
      %85 = sbr.rel (0) target = $region53
    $region52: #{osic_forward.1} parent=1 // pred_region
      %86 = dma.done [#allocation8], 2048
    $region53: #{osic_forward.1} parent=1 // pred_fallthru
      _
    %v87 = vlaneseq
    %v88 = vand.u32 %v87, 127
    %v89 = vld [vmem:[%s1] sm:$0xff]
    %90 = vset.pattern.permute.xlu0 0
    %91 = vperm.xlu0 %90, %v89
    %v92 = vpop.permute.xlu0 %91
    %vm93 = vcmp.eq.s32.totalorder %v88, %v92
    %v94 = vadd.s32 %v89, 10
    %95 = vset.pattern.permute.xlu0 1
    %96 = vperm.xlu0 %95, %v94
    %v97 = vpop.permute.xlu0 %96
    %vm98 = vcmp.eq.s32.totalorder %v88, %v97
    %vm99 = vmor %vm93, %vm98
    %v100 = vadd.s32 %v89, 17
    %101 = vset.pattern.permute.xlu0 2
    %102 = vperm.xlu0 %101, %v100
    %v103 = vpop.permute.xlu0 %102
    %vm104 = vcmp.eq.s32.totalorder %v88, %v103
    %vm105 = vmor %vm99, %vm104
    %v106 = vsel %vm105, 1, 0
    %v107 = vcvt.s32.f32 %v106
    %v108 = vld [vmem:[%s0] sm:$0xff]
    %v109 = vld [vmem:[#allocation2] sm:$0xff]
    %v110 = vld [vmem:[#allocation2 + $0x8] sm:$0xff]
    %v111 = vld [vmem:[#allocation2 + $0x10] sm:$0xff]
    %v112 = vld [vmem:[#allocation2 + $0x18] sm:$0xff]
    %v113 = vld [vmem:[#allocation2 + $0x20] sm:$0xff]
    %v114 = vld [vmem:[#allocation2 + $0x28] sm:$0x7]
    %v115 = vld [vmem:[#allocation4] sm:$0xff]
    %v116 = vld [vmem:[#allocation4 + $0x8] sm:$0xff]
    %v117 = vld [vmem:[#allocation4 + $0x10] sm:$0xff]
    %vm118 = vcmask 195584
    %v120 = vsel %vm118, %v107, 0
    %122 = vmatprep.subr.mxu0 0.0
    %123 = vmatpush1.msra.mxu0 %v115
    %124 = vmatprep.subr.mxu0 0.0
    %125 = vmatpush1.msra.mxu0 %v116
    %126 = vmatprep.subr.mxu0 0.0
    %127 = vmatpush1.msra.mxu0 %v117
    %128 = vmatprep.subr.mxu0 0.0
    %129 = vmatpush1.msra.mxu0 0.0
    %130 = vmatprep.subr.mxu0 0.0
    %131 = vmatpush1.msra.mxu0 0.0
    %132 = vmatprep.subr.mxu0 0.0
    %133 = vmatpush1.msra.mxu0 0.0
    %134 = vmatprep.subr.mxu0 0.0
    %135 = vmatpush1.msra.mxu0 0.0
    %136 = vmatprep.subr.mxu0 0.0
    %137 = vmatpush1.msra.mxu0 0.0
    %138 = vmatprep.subr.mxu0 0.0
    %139 = vmatpush1.msra.mxu0 0.0
    %140 = vmatprep.subr.mxu0 0.0
    %141 = vmatpush1.msra.mxu0 0.0
    %142 = vmatprep.subr.mxu0 0.0
    %143 = vmatpush1.msra.mxu0 0.0
    %144 = vmatprep.subr.mxu0 0.0
    %145 = vmatpush1.msra.mxu0 0.0
    %146 = vmatprep.subr.mxu0 0.0
    %147 = vmatpush1.msra.mxu0 0.0
    %148 = vmatprep.subr.mxu0 0.0
    %149 = vmatpush1.msra.mxu0 0.0
    %150 = vmatprep.subr.mxu0 0.0
    %151 = vmatpush1.msra.mxu0 0.0
    %152 = vmatprep.subr.mxu0 0.0
    %153 = vmatpush1.msra.mxu0 0.0
    %154 = vmatprep.subr.mxu0 0.0
    %155 = vmatpush1.msra.mxu0 0.0
    %156 = vmatprep.subr.mxu0 0.0
    %157 = vmatpush1.msra.mxu0 0.0
    %158 = vmatprep.subr.mxu0 0.0
    %159 = vmatpush1.msra.mxu0 0.0
    %160 = vmatprep.subr.mxu0 0.0
    %161 = vmatpush1.msra.mxu0 0.0
    %162 = vmatprep.subr.mxu0 0.0
    %163 = vmatpush1.msra.mxu0 0.0
    %164 = vmatprep.subr.mxu0 0.0
    %165 = vmatpush1.msra.mxu0 0.0
    %166 = vmatprep.subr.mxu0 0.0
    %167 = vmatpush1.msra.mxu0 0.0
    %168 = vmatprep.subr.mxu0 0.0
    %169 = vmatpush1.msra.mxu0 0.0
    %170 = vmatprep.subr.mxu0 0.0
    %171 = vmatpush1.msra.mxu0 0.0
    %172 = vmatprep.subr.mxu0 0.0
    %173 = vmatpush1.msra.mxu0 0.0
    %174 = vmatprep.subr.mxu0 0.0
    %175 = vmatpush1.msra.mxu0 0.0
    %176 = vmatprep.subr.mxu0 0.0
    %177 = vmatpush1.msra.mxu0 0.0
    %178 = vmatprep.subr.mxu0 0.0
    %179 = vmatpush1.msra.mxu0 0.0
    %180 = vmatprep.subr.mxu0 0.0
    %181 = vmatpush1.msra.mxu0 0.0
    %182 = vmatprep.subr.mxu0 0.0
    %183 = vmatpush1.msra.mxu0 0.0
    %184 = vmatprep.subr.mxu0 0.0
    %185 = vmatpush1.msra.mxu0 0.0
    %186 = vmatprep.mubr.f32.mxu0 0.0
    %187 = vmatmul.mubr.f32.gmra.mrb[0].mxu0 %v120
    %v188 = vpop.f32.mrb[0].mxu0
    %v189 = vadd.f32 0.0, %v188
    %v190 = vpop.f32.mrb[0].mxu0
    %191 = vdwg.mxu0
    %vm192 = vcmask 351232
    %v194 = vsel %vm192, %v108, 0
    %vm196 = vcmask 1042432
    %v198 = vsel %vm196, %v114, 0
    %200 = vmatprep.subr.mxu0 0.0
    %201 = vmatpush1.msra.mxu0 %v109
    %202 = vmatprep.subr.mxu0 0.0
    %203 = vmatpush1.msra.mxu0 %v110
    %204 = vmatprep.subr.mxu0 0.0
    %205 = vmatpush1.msra.mxu0 %v111
    %206 = vmatprep.subr.mxu0 0.0
    %207 = vmatpush1.msra.mxu0 %v112
    %208 = vmatprep.subr.mxu0 0.0
    %209 = vmatpush1.msra.mxu0 %v113
    %210 = vmatprep.subr.mxu0 0.0
    %211 = vmatpush1.msra.mxu0 %v198
    %212 = vmatprep.subr.mxu0 0.0
    %213 = vmatpush1.msra.mxu0 0.0
    %214 = vmatprep.subr.mxu0 0.0
    %215 = vmatpush1.msra.mxu0 0.0
    %216 = vmatprep.subr.mxu0 0.0
    %217 = vmatpush1.msra.mxu0 0.0
    %218 = vmatprep.subr.mxu0 0.0
    %219 = vmatpush1.msra.mxu0 0.0
    %220 = vmatprep.subr.mxu0 0.0
    %221 = vmatpush1.msra.mxu0 0.0
    %222 = vmatprep.subr.mxu0 0.0
    %223 = vmatpush1.msra.mxu0 0.0
    %224 = vmatprep.subr.mxu0 0.0
    %225 = vmatpush1.msra.mxu0 0.0
    %226 = vmatprep.subr.mxu0 0.0
    %227 = vmatpush1.msra.mxu0 0.0
    %228 = vmatprep.subr.mxu0 0.0
    %229 = vmatpush1.msra.mxu0 0.0
    %230 = vmatprep.subr.mxu0 0.0
    %231 = vmatpush1.msra.mxu0 0.0
    %232 = vmatprep.subr.mxu0 0.0
    %233 = vmatpush1.msra.mxu0 0.0
    %234 = vmatprep.subr.mxu0 0.0
    %235 = vmatpush1.msra.mxu0 0.0
    %236 = vmatprep.subr.mxu0 0.0
    %237 = vmatpush1.msra.mxu0 0.0
    %238 = vmatprep.subr.mxu0 0.0
    %239 = vmatpush1.msra.mxu0 0.0
    %240 = vmatprep.subr.mxu0 0.0
    %241 = vmatpush1.msra.mxu0 0.0
    %242 = vmatprep.subr.mxu0 0.0
    %243 = vmatpush1.msra.mxu0 0.0
    %244 = vmatprep.subr.mxu0 0.0
    %245 = vmatpush1.msra.mxu0 0.0
    %246 = vmatprep.subr.mxu0 0.0
    %247 = vmatpush1.msra.mxu0 0.0
    %248 = vmatprep.subr.mxu0 0.0
    %249 = vmatpush1.msra.mxu0 0.0
    %250 = vmatprep.subr.mxu0 0.0
    %251 = vmatpush1.msra.mxu0 0.0
    %252 = vmatprep.subr.mxu0 0.0
    %253 = vmatpush1.msra.mxu0 0.0
    %254 = vmatprep.subr.mxu0 0.0
    %255 = vmatpush1.msra.mxu0 0.0
    %256 = vmatprep.subr.mxu0 0.0
    %257 = vmatpush1.msra.mxu0 0.0
    %258 = vmatprep.subr.mxu0 0.0
    %259 = vmatpush1.msra.mxu0 0.0
    %260 = vmatprep.subr.mxu0 0.0
    %261 = vmatpush1.msra.mxu0 0.0
    %262 = vmatprep.subr.mxu0 0.0
    %263 = vmatpush1.msra.mxu0 0.0
    %264 = vmatprep.mubr.f32.mxu0 0.0
    %265 = vmatmul.mubr.f32.gmra.mrb[0].mxu0 %v194
    %v266 = vpop.f32.mrb[0].mxu0
    %v267 = vadd.f32 %v189, %v266
    %v268 = vpop.f32.mrb[0].mxu0
    %269 = vdwg.mxu0
    %v270 = vld [vmem:[%s4] sm:$0x1]
    %v272 = vlaneseq
    %v273 = vshrl.u32 %v272, 7
    %v274 = vsub.s32 0, %v273
    %v275 = vrot.slane %v270, %v274
    %v277 = vadd.f32 %v267, %v275
    %v278 = vmax.f32 %v277, 0.0
    %v279 = vld [vmem:[#allocation6] sm:$0xff]
    %v280 = vld [vmem:[#allocation6 + $0x8] sm:$0xff]
    %v281 = vld [vmem:[#allocation6 + $0x10] sm:$0xff]
    %v282 = vld [vmem:[#allocation6 + $0x18] sm:$0xff]
    %v283 = vld [vmem:[#allocation6 + $0x20] sm:$0xff]
    %v284 = vld [vmem:[#allocation6 + $0x28] sm:$0xff]
    %v285 = vld [vmem:[#allocation6 + $0x30] sm:$0xff]
    %v286 = vld [vmem:[#allocation6 + $0x38] sm:$0xff]
    %v287 = vld [vmem:[#allocation6 + $0x40] sm:$0xff]
    %v288 = vld [vmem:[#allocation6 + $0x48] sm:$0xff]
    %v289 = vld [vmem:[#allocation6 + $0x50] sm:$0xff]
    %v290 = vld [vmem:[#allocation6 + $0x58] sm:$0xff]
    %v291 = vld [vmem:[#allocation6 + $0x60] sm:$0xff]
    %v292 = vld [vmem:[#allocation6 + $0x68] sm:$0xff]
    %v293 = vld [vmem:[#allocation6 + $0x70] sm:$0xff]
    %v294 = vld [vmem:[#allocation6 + $0x78] sm:$0xff]
    %v295 = vld [vmem:[%s6] sm:$0x1]
    %v297 = vlaneseq
    %v298 = vshrl.u32 %v297, 7
    %v299 = vsub.s32 0, %v298
    %v300 = vrot.slane %v295, %v299
    %302 = vmatprep.subr.mxu0 0.0
    %303 = vmatpush1.msra.mxu0 %v279
    %304 = vmatprep.subr.mxu0 0.0
    %305 = vmatpush1.msra.mxu0 %v280
    %306 = vmatprep.subr.mxu0 0.0
    %307 = vmatpush1.msra.mxu0 %v281
    %308 = vmatprep.subr.mxu0 0.0
    %309 = vmatpush1.msra.mxu0 %v282
    %310 = vmatprep.subr.mxu0 0.0
    %311 = vmatpush1.msra.mxu0 %v283
    %312 = vmatprep.subr.mxu0 0.0
    %313 = vmatpush1.msra.mxu0 %v284
    %314 = vmatprep.subr.mxu0 0.0
    %315 = vmatpush1.msra.mxu0 %v285
    %316 = vmatprep.subr.mxu0 0.0
    %317 = vmatpush1.msra.mxu0 %v286
    %318 = vmatprep.subr.mxu0 0.0
    %319 = vmatpush1.msra.mxu0 %v287
    %320 = vmatprep.subr.mxu0 0.0
    %321 = vmatpush1.msra.mxu0 %v288
    %322 = vmatprep.subr.mxu0 0.0
    %323 = vmatpush1.msra.mxu0 %v289
    %324 = vmatprep.subr.mxu0 0.0
    %325 = vmatpush1.msra.mxu0 %v290
    %326 = vmatprep.subr.mxu0 0.0
    %327 = vmatpush1.msra.mxu0 %v291
    %328 = vmatprep.subr.mxu0 0.0
    %329 = vmatpush1.msra.mxu0 %v292
    %330 = vmatprep.subr.mxu0 0.0
    %331 = vmatpush1.msra.mxu0 %v293
    %332 = vmatprep.subr.mxu0 0.0
    %333 = vmatpush1.msra.mxu0 %v294
    %334 = vmatprep.subr.mxu0 0.0
    %335 = vmatpush1.msra.mxu0 0.0
    %336 = vmatprep.subr.mxu0 0.0
    %337 = vmatpush1.msra.mxu0 0.0
    %338 = vmatprep.subr.mxu0 0.0
    %339 = vmatpush1.msra.mxu0 0.0
    %340 = vmatprep.subr.mxu0 0.0
    %341 = vmatpush1.msra.mxu0 0.0
    %342 = vmatprep.subr.mxu0 0.0
    %343 = vmatpush1.msra.mxu0 0.0
    %344 = vmatprep.subr.mxu0 0.0
    %345 = vmatpush1.msra.mxu0 0.0
    %346 = vmatprep.subr.mxu0 0.0
    %347 = vmatpush1.msra.mxu0 0.0
    %348 = vmatprep.subr.mxu0 0.0
    %349 = vmatpush1.msra.mxu0 0.0
    %350 = vmatprep.subr.mxu0 0.0
    %351 = vmatpush1.msra.mxu0 0.0
    %352 = vmatprep.subr.mxu0 0.0
    %353 = vmatpush1.msra.mxu0 0.0
    %354 = vmatprep.subr.mxu0 0.0
    %355 = vmatpush1.msra.mxu0 0.0
    %356 = vmatprep.subr.mxu0 0.0
    %357 = vmatpush1.msra.mxu0 0.0
    %358 = vmatprep.subr.mxu0 0.0
    %359 = vmatpush1.msra.mxu0 0.0
    %360 = vmatprep.subr.mxu0 0.0
    %361 = vmatpush1.msra.mxu0 0.0
    %362 = vmatprep.subr.mxu0 0.0
    %363 = vmatpush1.msra.mxu0 0.0
    %364 = vmatprep.subr.mxu0 0.0
    %365 = vmatpush1.msra.mxu0 0.0
    %366 = vmatprep.mubr.f32.mxu0 0.0
    %367 = vmatmul.mubr.f32.gmra.mrb[0].mxu0 %v278
    %v368 = vpop.f32.mrb[0].mxu0
    %v369 = vadd.f32 %v300, %v368
    %v370 = vpop.f32.mrb[0].mxu0
    %371 = vdwg.mxu0
    %v372 = vmax.f32 %v369, 0.0
    %v373 = vld [vmem:[#allocation7] sm:$0xff]
    %v374 = vld [vmem:[#allocation7 + $0x8] sm:$0xff]
    %v375 = vld [vmem:[#allocation7 + $0x10] sm:$0xff]
    %v376 = vld [vmem:[#allocation7 + $0x18] sm:$0xff]
    %v377 = vld [vmem:[#allocation7 + $0x20] sm:$0xff]
    %v378 = vld [vmem:[#allocation7 + $0x28] sm:$0xff]
    %v379 = vld [vmem:[#allocation7 + $0x30] sm:$0xff]
    %v380 = vld [vmem:[#allocation7 + $0x38] sm:$0xff]
    %v381 = vld [vmem:[#allocation7 + $0x40] sm:$0xff]
    %v382 = vld [vmem:[#allocation7 + $0x48] sm:$0xff]
    %v383 = vld [vmem:[#allocation7 + $0x50] sm:$0xff]
    %v384 = vld [vmem:[#allocation7 + $0x58] sm:$0xff]
    %v385 = vld [vmem:[#allocation7 + $0x60] sm:$0xff]
    %v386 = vld [vmem:[#allocation7 + $0x68] sm:$0xff]
    %v387 = vld [vmem:[#allocation7 + $0x70] sm:$0xff]
    %v388 = vld [vmem:[#allocation7 + $0x78] sm:$0xff]
    %v389 = vld [vmem:[%s8] sm:$0x1]
    %v391 = vlaneseq
    %v392 = vshrl.u32 %v391, 7
    %v393 = vsub.s32 0, %v392
    %v394 = vrot.slane %v389, %v393
    %396 = vmatprep.subr.mxu0 0.0
    %397 = vmatpush1.msra.mxu0 %v373
    %398 = vmatprep.subr.mxu0 0.0
    %399 = vmatpush1.msra.mxu0 %v374
    %400 = vmatprep.subr.mxu0 0.0
    %401 = vmatpush1.msra.mxu0 %v375
    %402 = vmatprep.subr.mxu0 0.0
    %403 = vmatpush1.msra.mxu0 %v376
    %404 = vmatprep.subr.mxu0 0.0
    %405 = vmatpush1.msra.mxu0 %v377
    %406 = vmatprep.subr.mxu0 0.0
    %407 = vmatpush1.msra.mxu0 %v378
    %408 = vmatprep.subr.mxu0 0.0
    %409 = vmatpush1.msra.mxu0 %v379
    %410 = vmatprep.subr.mxu0 0.0
    %411 = vmatpush1.msra.mxu0 %v380
    %412 = vmatprep.subr.mxu0 0.0
    %413 = vmatpush1.msra.mxu0 %v381
    %414 = vmatprep.subr.mxu0 0.0
    %415 = vmatpush1.msra.mxu0 %v382
    %416 = vmatprep.subr.mxu0 0.0
    %417 = vmatpush1.msra.mxu0 %v383
    %418 = vmatprep.subr.mxu0 0.0
    %419 = vmatpush1.msra.mxu0 %v384
    %420 = vmatprep.subr.mxu0 0.0
    %421 = vmatpush1.msra.mxu0 %v385
    %422 = vmatprep.subr.mxu0 0.0
    %423 = vmatpush1.msra.mxu0 %v386
    %424 = vmatprep.subr.mxu0 0.0
    %425 = vmatpush1.msra.mxu0 %v387
    %426 = vmatprep.subr.mxu0 0.0
    %427 = vmatpush1.msra.mxu0 %v388
    %428 = vmatprep.subr.mxu0 0.0
    %429 = vmatpush1.msra.mxu0 0.0
    %430 = vmatprep.subr.mxu0 0.0
    %431 = vmatpush1.msra.mxu0 0.0
    %432 = vmatprep.subr.mxu0 0.0
    %433 = vmatpush1.msra.mxu0 0.0
    %434 = vmatprep.subr.mxu0 0.0
    %435 = vmatpush1.msra.mxu0 0.0
    %436 = vmatprep.subr.mxu0 0.0
    %437 = vmatpush1.msra.mxu0 0.0
    %438 = vmatprep.subr.mxu0 0.0
    %439 = vmatpush1.msra.mxu0 0.0
    %440 = vmatprep.subr.mxu0 0.0
    %441 = vmatpush1.msra.mxu0 0.0
    %442 = vmatprep.subr.mxu0 0.0
    %443 = vmatpush1.msra.mxu0 0.0
    %444 = vmatprep.subr.mxu0 0.0
    %445 = vmatpush1.msra.mxu0 0.0
    %446 = vmatprep.subr.mxu0 0.0
    %447 = vmatpush1.msra.mxu0 0.0
    %448 = vmatprep.subr.mxu0 0.0
    %449 = vmatpush1.msra.mxu0 0.0
    %450 = vmatprep.subr.mxu0 0.0
    %451 = vmatpush1.msra.mxu0 0.0
    %452 = vmatprep.subr.mxu0 0.0
    %453 = vmatpush1.msra.mxu0 0.0
    %454 = vmatprep.subr.mxu0 0.0
    %455 = vmatpush1.msra.mxu0 0.0
    %456 = vmatprep.subr.mxu0 0.0
    %457 = vmatpush1.msra.mxu0 0.0
    %458 = vmatprep.subr.mxu0 0.0
    %459 = vmatpush1.msra.mxu0 0.0
    %460 = vmatprep.mubr.f32.mxu0 0.0
    %461 = vmatmul.mubr.f32.gmra.mrb[0].mxu0 %v372
    %v462 = vpop.f32.mrb[0].mxu0
    %v463 = vadd.f32 %v394, %v462
    %v464 = vpop.f32.mrb[0].mxu0
    %465 = vdwg.mxu0
    %v466 = vmax.f32 %v463, 0.0
    %467 = vst [vmem:[%s9] sm:$0xff] %v466
    // Predicated region
    $region54: #{osic_forward.1} parent=1 // pred_check
      _
    $region55: #{osic_forward.1} parent=1 // pred_check_branch
      %469 = sbr.rel (0) target = $region57
    $region56: #{osic_forward.1} parent=1 // pred_region
      _
    $region57: #{osic_forward.1} parent=1 // pred_fallthru
      _
    // Predicated region
    $region58: #{osic_forward.1} parent=1 // pred_check
      _
    $region59: #{osic_forward.1} parent=1 // pred_check_branch
      %471 = sbr.rel (0) target = $region61
    $region60: #{osic_forward.1} parent=1 // pred_region
      _
    $region61: #{osic_forward.1} parent=1 // pred_fallthru
      _
    %472 = vsyncpa [#allocation3], 1
    %473 = vsyncpa [#allocation5], 1
    %474 = vsyncpa [#allocation8], 1

</llo_original>
